<compile_context>
chip_gen: v5e
topology: v5e:2x2
jax: 0.10.0
libtpu: 0.0.40
codegen_flags: <defaults>
</compile_context>

<pallas_src>
import jax
import jax.numpy as jnp
from jax.experimental import pallas as pl
from jax.experimental.pallas import tpu as pltpu

LANE = 128  # hidden widths are zero-padded to this many lanes (VMEM only)


def _round_up(x, m):
    return ((x + m - 1) // m) * m


def dqn_kernel(x_ref, w1_ref, b1_ref, w2_ref, b2_ref, w3_ref, b3_ref,
               wf_ref, bf_ref, o_ref):
    # All-f32 path; every jnp.dot accumulates in f32 on the MXU.
    h = jnp.dot(x_ref[...], w1_ref[...], preferred_element_type=jnp.float32)
    h = jnp.maximum(h + b1_ref[...], 0.0)
    # Layer 2 (64 -> zero-padded to 128 lanes; padded lanes stay exactly 0).
    h = jnp.dot(h, w2_ref[...], preferred_element_type=jnp.float32)
    h = jnp.maximum(h + b2_ref[...], 0.0)
    # Layer 3 (32 -> zero-padded to 128 lanes).
    h = jnp.dot(h, w3_ref[...], preferred_element_type=jnp.float32)
    h = jnp.maximum(h + b3_ref[...], 0.0)
    # Final layer: narrow N = action_dim output, linear.  Store is a masked
    # vst but uses the same number of store ops as a 128-lane padded tile
    # while writing up to 32x fewer HBM bytes.
    out = jnp.dot(h, wf_ref[...], preferred_element_type=jnp.float32)
    o_ref[...] = (out + bf_ref[...]).astype(o_ref.dtype)


def prepare_params(params):
    """f32 params; hidden dims zero-padded to 128 lanes, output dim unpadded.

    Weights are expected pre-transposed as (in_features, out_features);
    biases may be (n,) or (1, n).
    """
    def as_bias(b, width):
        b = jnp.reshape(jnp.asarray(b, jnp.float32), (1, -1))
        out = jnp.zeros((1, width), jnp.float32)
        return out.at[:, :b.shape[1]].set(b)

    def pad_w(w, rows, cols):
        w = jnp.asarray(w, jnp.float32)
        out = jnp.zeros((rows, cols), jnp.float32)
        return out.at[:w.shape[0], :w.shape[1]].set(w)

    action_dim = params["wf"].shape[1]
    w1 = jnp.asarray(params["w1"], jnp.float32)           # (in, 128)
    b1 = as_bias(params["b1"], LANE)                       # (1, 128)
    w2 = pad_w(params["w2"], LANE, LANE)                   # (128, 128)
    b2 = as_bias(params["b2"], LANE)                       # (1, 128)
    w3 = pad_w(params["w3"], LANE, LANE)                   # (128, 128)
    b3 = as_bias(params["b3"], LANE)                       # (1, 128)
    wf = pad_w(params["wf"], LANE, action_dim)             # (128, A)
    bf = as_bias(params["bf"], action_dim)                 # (1, A)
    return (w1, b1, w2, b2, w3, b3, wf, bf), action_dim


def _choose_tiling(batch, in_dim, action_dim, tile_b):
    """Pick (tile_rows, n_steps, padded_batch) with minimal padding waste."""
    # x and out tiles are double-buffered f32; keep them inside a conservative
    # VMEM budget (weights + biases are < 0.2 MiB and resident).
    bytes_per_row = 2 * 4 * (in_dim + action_dim)
    vmem_budget = 12 << 20
    tb_vmem_cap = max(8, (vmem_budget // bytes_per_row) // 8 * 8)
    tb_cap = max(8, min(int(tile_b), tb_vmem_cap))
    if batch <= tb_cap:
        tb = _round_up(batch, 8)
        return tb, 1, tb
    n_steps = -(-batch // tb_cap)
    if n_steps % 2:
        # Even grid length so dimension_semantics=("parallel",) splits the
        # steps evenly across v7x's two TensorCores (no-op on v5e/v6e).
        n_steps += 1
    tb = _round_up(-(-batch // n_steps), 8)
    return tb, n_steps, tb * n_steps


def dqn_forward(x, params, *, tile_b=2048):
    """x: (batch, input_dim) f32. Returns (batch, action_dim) f32."""
    batch, in_dim = x.shape
    weights, action_dim = prepare_params(params)

    tb, n_steps, b_pad = _choose_tiling(batch, in_dim, action_dim, tile_b)

    if b_pad != batch:
        # Fused pad (no zeros().at[].set() round-trip).  Padded rows produce
        # ReLU(bias) garbage that is sliced off below - wasted work only.
        xp = jnp.pad(x.astype(jnp.float32), ((0, b_pad - batch), (0, 0)))
    else:
        xp = x.astype(jnp.float32)

    grid = (n_steps,)

    in_specs = [pl.BlockSpec((tb, in_dim), lambda i: (i, 0))]
    # Weights / biases: full-extent blocks, same block every step -> resident.
    in_specs += [pl.BlockSpec(w.shape, lambda i: (0, 0)) for w in weights]
    out_spec = pl.BlockSpec((tb, action_dim), lambda i: (i, 0))

    flops = 2 * b_pad * (in_dim * LANE + 2 * LANE * LANE + LANE * action_dim)
    bytes_accessed = (xp.size * 4
                      + sum(int(w.size) * 4 for w in weights)
                      + b_pad * action_dim * 4)

    out = pl.pallas_call(
        dqn_kernel,
        out_shape=jax.ShapeDtypeStruct((b_pad, action_dim), jnp.float32),
        grid=grid,
        in_specs=in_specs,
        out_specs=out_spec,
        compiler_params=pltpu.CompilerParams(
            dimension_semantics=("parallel",),
            vmem_limit_bytes=32 << 20),
        cost_estimate=pl.CostEstimate(
            flops=flops, transcendentals=0, bytes_accessed=bytes_accessed),
    )(xp, *weights)

    if b_pad != batch:
        out = out[:batch]
    return out


def init_linear(key, in_features, out_features):
    """PyTorch-style nn.Linear init (uniform +/- 1/sqrt(in)).
    Weight stored as (in, out) (pre-transposed), bias as (1, out)."""
    kw, kb = jax.random.split(key)
    bound = 1.0 / jnp.sqrt(jnp.float32(in_features))
    w = jax.random.uniform(kw, (in_features, out_features), jnp.float32,
                           minval=-bound, maxval=bound)
    b = jax.random.uniform(kb, (1, out_features), jnp.float32,
                           minval=-bound, maxval=bound)
    return w, b


def init_params(key, input_dim, action_dim):
    k1, k2, k3, k4 = jax.random.split(key, 4)
    w1, b1 = init_linear(k1, input_dim, 128)
    w2, b2 = init_linear(k2, 128, 64)
    w3, b3 = init_linear(k3, 64, 32)
    wf, bf = init_linear(k4, 32, action_dim)
    return {"w1": w1, "b1": b1, "w2": w2, "b2": b2,
            "w3": w3, "b3": b3, "wf": wf, "bf": bf}


def reference_forward(x, p):
    """Plain f32 reference matching the PyTorch forward pass."""
    def b2d(b):
        return jnp.reshape(b, (1, -1))
    h = jnp.maximum(jnp.dot(x, p["w1"]) + b2d(p["b1"]), 0.0)
    h = jnp.maximum(jnp.dot(h, p["w2"]) + b2d(p["b2"]), 0.0)
    h = jnp.maximum(jnp.dot(h, p["w3"]) + b2d(p["b3"]), 0.0)
    return jnp.dot(h, p["wf"]) + b2d(p["bf"])


if __name__ == "__main__":
    key = jax.random.PRNGKey(0)
    kx, kx2, kp = jax.random.split(key, 3)

    batch = 8
    input_dim = 16
    action_dim = 4

    params = init_params(kp, input_dim, action_dim)

    # Small single-tile case.
    x = jax.random.normal(kx, (batch, input_dim), jnp.float32)
    out = jax.block_until_ready(dqn_forward(x, params))
    ref = reference_forward(x, params)
    assert out.shape == (batch, action_dim)
    assert jnp.allclose(out, ref, atol=1e-2, rtol=1e-2), "mismatch (small case)"

    # Multi-step grid + ragged batch (exercises padding / even-grid logic).
    batch2 = 300
    x2 = jax.random.normal(kx2, (batch2, input_dim), jnp.float32)
    out2 = jax.block_until_ready(dqn_forward(x2, params, tile_b=128))
    ref2 = reference_forward(x2, params)
    assert out2.shape == (batch2, action_dim)
    assert jnp.allclose(out2, ref2, atol=1e-2, rtol=1e-2), "mismatch (tiled case)"

    print("KERNEL_OK")
</pallas_src>

<mosaic_0001>
module attributes {stable_mosaic.version = 11 : i64} {
  func.func @dqn_kernel(%arg0: i32, %arg1: memref<8x16xf32, #tpu.memory_space<vmem>>, %arg2: memref<16x128xf32, #tpu.memory_space<vmem>>, %arg3: memref<1x128xf32, #tpu.memory_space<vmem>>, %arg4: memref<128x128xf32, #tpu.memory_space<vmem>>, %arg5: memref<1x128xf32, #tpu.memory_space<vmem>>, %arg6: memref<128x128xf32, #tpu.memory_space<vmem>>, %arg7: memref<1x128xf32, #tpu.memory_space<vmem>>, %arg8: memref<128x4xf32, #tpu.memory_space<vmem>>, %arg9: memref<1x4xf32, #tpu.memory_space<vmem>>, %arg10: memref<8x4xf32, #tpu.memory_space<vmem>>) attributes {dimension_semantics = [#tpu.dimension_semantics<parallel>], iteration_bounds = array<i64: 1>, scalar_prefetch = 0 : i64, scratch_operands = 0 : i64, tpu.core_type = #tpu.core_type<tc>, window_params = [{transform_indices = @transform_0, window_bounds = array<i64: 8, 16>}, {pipeline_mode = #tpu.pipeline_mode<synchronous>, transform_indices = @transform_1, window_bounds = array<i64: 16, 128>}, {pipeline_mode = #tpu.pipeline_mode<synchronous>, transform_indices = @transform_2, window_bounds = array<i64: 1, 128>}, {pipeline_mode = #tpu.pipeline_mode<synchronous>, transform_indices = @transform_3, window_bounds = array<i64: 128, 128>}, {pipeline_mode = #tpu.pipeline_mode<synchronous>, transform_indices = @transform_4, window_bounds = array<i64: 1, 128>}, {pipeline_mode = #tpu.pipeline_mode<synchronous>, transform_indices = @transform_5, window_bounds = array<i64: 128, 128>}, {pipeline_mode = #tpu.pipeline_mode<synchronous>, transform_indices = @transform_6, window_bounds = array<i64: 1, 128>}, {pipeline_mode = #tpu.pipeline_mode<synchronous>, transform_indices = @transform_7, window_bounds = array<i64: 128, 4>}, {pipeline_mode = #tpu.pipeline_mode<synchronous>, transform_indices = @transform_8, window_bounds = array<i64: 1, 4>}, {transform_indices = @transform_9, window_bounds = array<i64: 8, 4>}]} {
    %c0 = arith.constant 0 : index
    %c0_0 = arith.constant 0 : index
    %0 = vector.load %arg1[%c0, %c0_0] : memref<8x16xf32, #tpu.memory_space<vmem>>, vector<8x16xf32>
    %c0_1 = arith.constant 0 : index
    %c0_2 = arith.constant 0 : index
    %1 = vector.load %arg2[%c0_1, %c0_2] : memref<16x128xf32, #tpu.memory_space<vmem>>, vector<16x128xf32>
    %cst = arith.constant dense<0.000000e+00> : vector<8x128xf32>
    %2 = tpu.matmul %0, %1, %cst {dimension_numbers = #tpu.dot_dimension_numbers<[1], [0], [0], [1], [0, 0, 1, 1], [], []>} : vector<8x16xf32>, vector<16x128xf32>, vector<8x128xf32> -> vector<8x128xf32>
    %c0_3 = arith.constant 0 : index
    %c0_4 = arith.constant 0 : index
    %3 = vector.load %arg3[%c0_3, %c0_4] : memref<1x128xf32, #tpu.memory_space<vmem>>, vector<1x128xf32>
    %4 = vector.broadcast %3 : vector<1x128xf32> to vector<8x128xf32>
    %5 = arith.addf %2, %4 : vector<8x128xf32>
    %cst_5 = arith.constant 0.000000e+00 : f32
    %6 = vector.broadcast %cst_5 : f32 to vector<8x128xf32>
    %7 = arith.maximumf %5, %6 : vector<8x128xf32>
    %c0_6 = arith.constant 0 : index
    %c0_7 = arith.constant 0 : index
    %8 = vector.load %arg4[%c0_6, %c0_7] : memref<128x128xf32, #tpu.memory_space<vmem>>, vector<128x128xf32>
    %cst_8 = arith.constant dense<0.000000e+00> : vector<8x128xf32>
    %9 = tpu.matmul %7, %8, %cst_8 {dimension_numbers = #tpu.dot_dimension_numbers<[1], [0], [0], [1], [0, 0, 1, 1], [], []>} : vector<8x128xf32>, vector<128x128xf32>, vector<8x128xf32> -> vector<8x128xf32>
    %c0_9 = arith.constant 0 : index
    %c0_10 = arith.constant 0 : index
    %10 = vector.load %arg5[%c0_9, %c0_10] : memref<1x128xf32, #tpu.memory_space<vmem>>, vector<1x128xf32>
    %11 = vector.broadcast %10 : vector<1x128xf32> to vector<8x128xf32>
    %12 = arith.addf %9, %11 : vector<8x128xf32>
    %cst_11 = arith.constant 0.000000e+00 : f32
    %13 = vector.broadcast %cst_11 : f32 to vector<8x128xf32>
    %14 = arith.maximumf %12, %13 : vector<8x128xf32>
    %c0_12 = arith.constant 0 : index
    %c0_13 = arith.constant 0 : index
    %15 = vector.load %arg6[%c0_12, %c0_13] : memref<128x128xf32, #tpu.memory_space<vmem>>, vector<128x128xf32>
    %cst_14 = arith.constant dense<0.000000e+00> : vector<8x128xf32>
    %16 = tpu.matmul %14, %15, %cst_14 {dimension_numbers = #tpu.dot_dimension_numbers<[1], [0], [0], [1], [0, 0, 1, 1], [], []>} : vector<8x128xf32>, vector<128x128xf32>, vector<8x128xf32> -> vector<8x128xf32>
    %c0_15 = arith.constant 0 : index
    %c0_16 = arith.constant 0 : index
    %17 = vector.load %arg7[%c0_15, %c0_16] : memref<1x128xf32, #tpu.memory_space<vmem>>, vector<1x128xf32>
    %18 = vector.broadcast %17 : vector<1x128xf32> to vector<8x128xf32>
    %19 = arith.addf %16, %18 : vector<8x128xf32>
    %cst_17 = arith.constant 0.000000e+00 : f32
    %20 = vector.broadcast %cst_17 : f32 to vector<8x128xf32>
    %21 = arith.maximumf %19, %20 : vector<8x128xf32>
    %c0_18 = arith.constant 0 : index
    %c0_19 = arith.constant 0 : index
    %22 = vector.load %arg8[%c0_18, %c0_19] : memref<128x4xf32, #tpu.memory_space<vmem>>, vector<128x4xf32>
    %cst_20 = arith.constant dense<0.000000e+00> : vector<8x4xf32>
    %23 = tpu.matmul %21, %22, %cst_20 {dimension_numbers = #tpu.dot_dimension_numbers<[1], [0], [0], [1], [0, 0, 1, 1], [], []>} : vector<8x128xf32>, vector<128x4xf32>, vector<8x4xf32> -> vector<8x4xf32>
    %c0_21 = arith.constant 0 : index
    %c0_22 = arith.constant 0 : index
    %24 = vector.load %arg9[%c0_21, %c0_22] : memref<1x4xf32, #tpu.memory_space<vmem>>, vector<1x4xf32>
    %25 = vector.broadcast %24 : vector<1x4xf32> to vector<8x4xf32>
    %26 = arith.addf %23, %25 : vector<8x4xf32>
    %c0_23 = arith.constant 0 : index
    %c0_24 = arith.constant 0 : index
    %27 = vector.load %arg10[%c0_23, %c0_24] : memref<8x4xf32, #tpu.memory_space<vmem>>, vector<8x4xf32>
    tpu.vector_store %arg10[%c0_23, %c0_24], %26 {strides = array<i32>} : memref<8x4xf32, #tpu.memory_space<vmem>>, vector<8x4xf32>,
    return
  }
  func.func @transform_0(%arg0: i32) -> (i32, i32) {
    %c0_i32 = arith.constant 0 : i32
    %c0_i32_0 = arith.constant 0 : i32
    return %arg0, %c0_i32 : i32, i32
  }
  func.func @transform_1(%arg0: i32) -> (i32, i32) {
    %c0_i32 = arith.constant 0 : i32
    %c0_i32_0 = arith.constant 0 : i32
    %c0_i32_1 = arith.constant 0 : i32
    return %c0_i32, %c0_i32_0 : i32, i32
  }
  func.func @transform_2(%arg0: i32) -> (i32, i32) {
    %c0_i32 = arith.constant 0 : i32
    %c0_i32_0 = arith.constant 0 : i32
    %c0_i32_1 = arith.constant 0 : i32
    return %c0_i32, %c0_i32_0 : i32, i32
  }
  func.func @transform_3(%arg0: i32) -> (i32, i32) {
    %c0_i32 = arith.constant 0 : i32
    %c0_i32_0 = arith.constant 0 : i32
    %c0_i32_1 = arith.constant 0 : i32
    return %c0_i32, %c0_i32_0 : i32, i32
  }
  func.func @transform_4(%arg0: i32) -> (i32, i32) {
    %c0_i32 = arith.constant 0 : i32
    %c0_i32_0 = arith.constant 0 : i32
    %c0_i32_1 = arith.constant 0 : i32
    return %c0_i32, %c0_i32_0 : i32, i32
  }
  func.func @transform_5(%arg0: i32) -> (i32, i32) {
    %c0_i32 = arith.constant 0 : i32
    %c0_i32_0 = arith.constant 0 : i32
    %c0_i32_1 = arith.constant 0 : i32
    return %c0_i32, %c0_i32_0 : i32, i32
  }
  func.func @transform_6(%arg0: i32) -> (i32, i32) {
    %c0_i32 = arith.constant 0 : i32
    %c0_i32_0 = arith.constant 0 : i32
    %c0_i32_1 = arith.constant 0 : i32
    return %c0_i32, %c0_i32_0 : i32, i32
  }
  func.func @transform_7(%arg0: i32) -> (i32, i32) {
    %c0_i32 = arith.constant 0 : i32
    %c0_i32_0 = arith.constant 0 : i32
    %c0_i32_1 = arith.constant 0 : i32
    return %c0_i32, %c0_i32_0 : i32, i32
  }
  func.func @transform_8(%arg0: i32) -> (i32, i32) {
    %c0_i32 = arith.constant 0 : i32
    %c0_i32_0 = arith.constant 0 : i32
    %c0_i32_1 = arith.constant 0 : i32
    return %c0_i32, %c0_i32_0 : i32, i32
  }
  func.func @transform_9(%arg0: i32) -> (i32, i32) {
    %c0_i32 = arith.constant 0 : i32
    %c0_i32_0 = arith.constant 0 : i32
    return %arg0, %c0_i32 : i32, i32
  }
}

</mosaic_0001>

<llo_original>
// kernel: tpu_custom_call.1
$region0: #{tpu_custom_call.1}
  #allocation0 [shape = 'u32[]', space=smem, size = 0x4, offset = 0x4, fixed_abs, tag = 'smem constant byte address 0x4 - core index']
  #allocation1 [shape = 'u32[72,128]{1,0:T(1,128)}', space=vmem, size = 0x9000, scoped, tag = 'internal scratch']
  %s0 = inlined_call_operand.hbm [shape: f32[8,16], index: 0, kind: input, shape index: {}]
  %s1 = inlined_call_operand.hbm [shape: f32[16,128], index: 1, kind: input, shape index: {}]
  %s2 = inlined_call_operand.vmem [shape: f32[1,128], index: 2, kind: input, shape index: {}]
  %s3 = inlined_call_operand.vmem [shape: f32[128,128], index: 3, kind: input, shape index: {}]
  %s4 = inlined_call_operand.vmem [shape: f32[1,128], index: 4, kind: input, shape index: {}]
  %s5 = inlined_call_operand.hbm [shape: f32[128,128], index: 5, kind: input, shape index: {}]
  %s6 = inlined_call_operand.vmem [shape: f32[1,128], index: 6, kind: input, shape index: {}]
  %s7 = inlined_call_operand.vmem [shape: f32[128,4], index: 7, kind: input, shape index: {}]
  %s8 = inlined_call_operand.vmem [shape: f32[1,4], index: 8, kind: input, shape index: {}]
  %s9 = inlined_call_operand.vmem [shape: f32[8,4], index: 9, kind: output, shape index: {}]
  %s10 = sld [smem:[#allocation0]]
  $region58: #{tpu_custom_call.1} parent=0
    _
  %s12 = ssub.s32 1, %s10
  %s13 = scalar_select 0, %s12, %s10
  $region1: #{tpu_custom_call.1} parent=0
    #allocation2 [shape = 'u8[4096]{0}', space=vmem, size = 0x1000, scoped, tag = 'input window, operand 0, single buffered']
    #allocation3 [shape = 's32[1]{0}', space=sflag, size = 0x4, scoped, tag = 'scoped memory for tpu_custom_call.1']
    #allocation4 [shape = 'u8[8192]{0}', space=vmem, size = 0x2000, scoped, tag = 'input window, operand 1, single buffered']
    #allocation5 [shape = 's32[1]{0}', space=sflag, size = 0x4, scoped, tag = 'scoped memory for tpu_custom_call.1']
    #allocation6 [shape = 'u8[65536]{0}', space=vmem, size = 0x10000, scoped, tag = 'input window, operand 5, single buffered']
    %14 = vsyncpa [#allocation3], 0
    %15 = vsyncpa [#allocation5], 0
    // Predicated region
    $region2: #{tpu_custom_call.1} parent=1 // pred_check
      _
    $region3: #{tpu_custom_call.1} parent=1 // pred_check_branch
      %17 = sbr.rel (0) target = $region5
    $region4: #{tpu_custom_call.1} parent=1 // pred_region
      %19 = vsyncadd [#allocation3], 0
      %s21 = sshll.u32 %s0, 4
      %s22 = int_to_ptr.hbm [resolvable:$true] %s21
      %s23 = sshll.u32 [#allocation2], 4
      %s24 = int_to_ptr.vmem [resolvable:$true] %s23
      %26 = dma.hbm_to_vmem [thread:$0]  %s22, 128, %s24, [#allocation3]
    $region5: #{tpu_custom_call.1} parent=1 // pred_fallthru
      _
    // Predicated region
    $region6: #{tpu_custom_call.1} parent=1 // pred_check
      _
    $region7: #{tpu_custom_call.1} parent=1 // pred_check_branch
      %28 = sbr.rel (0) target = $region9
    $region8: #{tpu_custom_call.1} parent=1 // pred_region
      %30 = vsyncadd [#allocation5], 0
      %s31 = sshll.u32 %s1, 4
      %s32 = int_to_ptr.hbm [resolvable:$true] %s31
      %s33 = sshll.u32 [#allocation4], 4
      %s34 = int_to_ptr.vmem [resolvable:$true] %s33
      %39 = dma.hbm_to_vmem [thread:$0]  %s32, 256, %s34, [#allocation5], 128, 128, 8
    $region9: #{tpu_custom_call.1} parent=1 // pred_fallthru
      _
    // Predicated region
    $region10: #{tpu_custom_call.1} parent=1 // pred_check
      _
    $region11: #{tpu_custom_call.1} parent=1 // pred_check_branch
      %41 = sbr.rel (0) target = $region13
    $region12: #{tpu_custom_call.1} parent=1 // pred_region
      _
    $region13: #{tpu_custom_call.1} parent=1 // pred_fallthru
      _
    // Predicated region
    $region14: #{tpu_custom_call.1} parent=1 // pred_check
      _
    $region15: #{tpu_custom_call.1} parent=1 // pred_check_branch
      %43 = sbr.rel (0) target = $region17
    $region16: #{tpu_custom_call.1} parent=1 // pred_region
      _
    $region17: #{tpu_custom_call.1} parent=1 // pred_fallthru
      _
    // Predicated region
    $region18: #{tpu_custom_call.1} parent=1 // pred_check
      _
    $region19: #{tpu_custom_call.1} parent=1 // pred_check_branch
      %45 = sbr.rel (0) target = $region21
    $region20: #{tpu_custom_call.1} parent=1 // pred_region
      _
    $region21: #{tpu_custom_call.1} parent=1 // pred_fallthru
      _
    // Predicated region
    $region22: #{tpu_custom_call.1} parent=1 // pred_check
      _
    $region23: #{tpu_custom_call.1} parent=1 // pred_check_branch
      %47 = sbr.rel (0) target = $region25
    $region24: #{tpu_custom_call.1} parent=1 // pred_region
      %49 = vsyncadd [#allocation5], 0
      %s50 = sshll.u32 %s5, 4
      %s51 = int_to_ptr.hbm [resolvable:$true] %s50
      %s52 = sshll.u32 [#allocation6], 4
      %s53 = int_to_ptr.vmem [resolvable:$true] %s52
      %58 = dma.hbm_to_vmem [thread:$0]  %s51, 2048, %s53, [#allocation5], 128, 128, 8
    $region25: #{tpu_custom_call.1} parent=1 // pred_fallthru
      _
    // Predicated region
    $region26: #{tpu_custom_call.1} parent=1 // pred_check
      _
    $region27: #{tpu_custom_call.1} parent=1 // pred_check_branch
      %60 = sbr.rel (0) target = $region29
    $region28: #{tpu_custom_call.1} parent=1 // pred_region
      _
    $region29: #{tpu_custom_call.1} parent=1 // pred_fallthru
      _
    // Predicated region
    $region30: #{tpu_custom_call.1} parent=1 // pred_check
      _
    $region31: #{tpu_custom_call.1} parent=1 // pred_check_branch
      %62 = sbr.rel (0) target = $region33
    $region32: #{tpu_custom_call.1} parent=1 // pred_region
      _
    $region33: #{tpu_custom_call.1} parent=1 // pred_fallthru
      _
    // Predicated region
    $region34: #{tpu_custom_call.1} parent=1 // pred_check
      _
    $region35: #{tpu_custom_call.1} parent=1 // pred_check_branch
      %64 = sbr.rel (0) target = $region37
    $region36: #{tpu_custom_call.1} parent=1 // pred_region
      _
    $region37: #{tpu_custom_call.1} parent=1 // pred_fallthru
      _
    // Predicated region
    $region38: #{tpu_custom_call.1} parent=1 // pred_check
      _
    $region39: #{tpu_custom_call.1} parent=1 // pred_check_branch
      %66 = sbr.rel (0) target = $region41
    $region40: #{tpu_custom_call.1} parent=1 // pred_region
      %68 = dma.done [#allocation3], 128
    $region41: #{tpu_custom_call.1} parent=1 // pred_fallthru
      _
    // Predicated region
    $region42: #{tpu_custom_call.1} parent=1 // pred_check
      _
    $region43: #{tpu_custom_call.1} parent=1 // pred_check_branch
      %70 = sbr.rel (0) target = $region45
    $region44: #{tpu_custom_call.1} parent=1 // pred_region
      %72 = dma.done [#allocation5], 256
    $region45: #{tpu_custom_call.1} parent=1 // pred_fallthru
      _
    // Predicated region
    $region46: #{tpu_custom_call.1} parent=1 // pred_check
      _
    $region47: #{tpu_custom_call.1} parent=1 // pred_check_branch
      %74 = sbr.rel (0) target = $region49
    $region48: #{tpu_custom_call.1} parent=1 // pred_region
      %76 = dma.done [#allocation5], 2048
    $region49: #{tpu_custom_call.1} parent=1 // pred_fallthru
      _
    %v77 = vld [vmem:[#allocation2] sm:$0xff]
    %v78 = vld [vmem:[#allocation4] sm:$0xff]
    %v79 = vld [vmem:[#allocation4 + $0x8] sm:$0xff]
    %v80 = vld [vmem:[%s2] sm:$0x1]
    %v82 = vperm.slane %v80, 0
    %vm84 = vcmask 130048
    %v86 = vsel %vm84, %v77, 0
    %88 = vmatpush.msra.mxu0 0.0
    %89 = vmatpush.msra.mxu0 0.0
    %90 = vmatpush.msra.mxu0 0.0
    %91 = vmatpush.msra.mxu0 0.0
    %92 = vmatpush.msra.mxu0 0.0
    %93 = vmatpush.msra.mxu0 0.0
    %94 = vmatpush.msra.mxu0 0.0
    %95 = vmatpush.msra.mxu0 0.0
    %96 = vmatpush.msra.mxu0 0.0
    %97 = vmatpush.msra.mxu0 0.0
    %98 = vmatpush.msra.mxu0 0.0
    %99 = vmatpush.msra.mxu0 0.0
    %100 = vmatpush.msra.mxu0 0.0
    %101 = vmatpush.msra.mxu0 0.0
    %102 = vmatpush.msra.mxu0 %v79
    %103 = vmatpush.msra.mxu0 %v78
    %104 = vmatmul.f32.gmra.mxu0 %v86
    %v105 = vpop.f32.mrf.mxu0
    %v106 = vadd.f32 %v82, %v105
    %107 = vdwg.mxu0
    %v108 = vmax.f32 %v106, 0.0
    %v109 = vld [vmem:[%s3] sm:$0xff]
    %v110 = vld [vmem:[%s3 + $0x8] sm:$0xff]
    %v111 = vld [vmem:[%s3 + $0x10] sm:$0xff]
    %v112 = vld [vmem:[%s3 + $0x18] sm:$0xff]
    %v113 = vld [vmem:[%s3 + $0x20] sm:$0xff]
    %v114 = vld [vmem:[%s3 + $0x28] sm:$0xff]
    %v115 = vld [vmem:[%s3 + $0x30] sm:$0xff]
    %v116 = vld [vmem:[%s3 + $0x38] sm:$0xff]
    %v117 = vld [vmem:[%s3 + $0x40] sm:$0xff]
    %v118 = vld [vmem:[%s3 + $0x48] sm:$0xff]
    %v119 = vld [vmem:[%s3 + $0x50] sm:$0xff]
    %v120 = vld [vmem:[%s3 + $0x58] sm:$0xff]
    %v121 = vld [vmem:[%s3 + $0x60] sm:$0xff]
    %v122 = vld [vmem:[%s3 + $0x68] sm:$0xff]
    %v123 = vld [vmem:[%s3 + $0x70] sm:$0xff]
    %v124 = vld [vmem:[%s3 + $0x78] sm:$0xff]
    %v125 = vld [vmem:[%s4] sm:$0x1]
    %v127 = vperm.slane %v125, 0
    %129 = vmatpush.msra.mxu0 %v124
    %130 = vmatpush.msra.mxu0 %v123
    %131 = vmatpush.msra.mxu0 %v122
    %132 = vmatpush.msra.mxu0 %v121
    %133 = vmatpush.msra.mxu0 %v120
    %134 = vmatpush.msra.mxu0 %v119
    %135 = vmatpush.msra.mxu0 %v118
    %136 = vmatpush.msra.mxu0 %v117
    %137 = vmatpush.msra.mxu0 %v116
    %138 = vmatpush.msra.mxu0 %v115
    %139 = vmatpush.msra.mxu0 %v114
    %140 = vmatpush.msra.mxu0 %v113
    %141 = vmatpush.msra.mxu0 %v112
    %142 = vmatpush.msra.mxu0 %v111
    %143 = vmatpush.msra.mxu0 %v110
    %144 = vmatpush.msra.mxu0 %v109
    %145 = vmatmul.f32.gmra.mxu0 %v108
    %v146 = vpop.f32.mrf.mxu0
    %v147 = vadd.f32 %v127, %v146
    %148 = vdwg.mxu0
    %v149 = vmax.f32 %v147, 0.0
    %v150 = vld [vmem:[#allocation6] sm:$0xff]
    %v151 = vld [vmem:[#allocation6 + $0x8] sm:$0xff]
    %v152 = vld [vmem:[#allocation6 + $0x10] sm:$0xff]
    %v153 = vld [vmem:[#allocation6 + $0x18] sm:$0xff]
    %v154 = vld [vmem:[#allocation6 + $0x20] sm:$0xff]
    %v155 = vld [vmem:[#allocation6 + $0x28] sm:$0xff]
    %v156 = vld [vmem:[#allocation6 + $0x30] sm:$0xff]
    %v157 = vld [vmem:[#allocation6 + $0x38] sm:$0xff]
    %v158 = vld [vmem:[#allocation6 + $0x40] sm:$0xff]
    %v159 = vld [vmem:[#allocation6 + $0x48] sm:$0xff]
    %v160 = vld [vmem:[#allocation6 + $0x50] sm:$0xff]
    %v161 = vld [vmem:[#allocation6 + $0x58] sm:$0xff]
    %v162 = vld [vmem:[#allocation6 + $0x60] sm:$0xff]
    %v163 = vld [vmem:[#allocation6 + $0x68] sm:$0xff]
    %v164 = vld [vmem:[#allocation6 + $0x70] sm:$0xff]
    %v165 = vld [vmem:[#allocation6 + $0x78] sm:$0xff]
    %v166 = vld [vmem:[%s6] sm:$0x1]
    %v168 = vperm.slane %v166, 0
    %170 = vmatpush.msra.mxu0 %v165
    %171 = vmatpush.msra.mxu0 %v164
    %172 = vmatpush.msra.mxu0 %v163
    %173 = vmatpush.msra.mxu0 %v162
    %174 = vmatpush.msra.mxu0 %v161
    %175 = vmatpush.msra.mxu0 %v160
    %176 = vmatpush.msra.mxu0 %v159
    %177 = vmatpush.msra.mxu0 %v158
    %178 = vmatpush.msra.mxu0 %v157
    %179 = vmatpush.msra.mxu0 %v156
    %180 = vmatpush.msra.mxu0 %v155
    %181 = vmatpush.msra.mxu0 %v154
    %182 = vmatpush.msra.mxu0 %v153
    %183 = vmatpush.msra.mxu0 %v152
    %184 = vmatpush.msra.mxu0 %v151
    %185 = vmatpush.msra.mxu0 %v150
    %186 = vmatmul.f32.gmra.mxu0 %v149
    %v187 = vpop.f32.mrf.mxu0
    %v188 = vadd.f32 %v168, %v187
    %189 = vdwg.mxu0
    %v190 = vmax.f32 %v188, 0.0
    %v191 = vld [vmem:[%s7] sm:$0xff]
    %v192 = vld [vmem:[%s7 + $0x8] sm:$0xff]
    %v193 = vld [vmem:[%s7 + $0x10] sm:$0xff]
    %v194 = vld [vmem:[%s7 + $0x18] sm:$0xff]
    %v195 = vld [vmem:[%s7 + $0x20] sm:$0xff]
    %v196 = vld [vmem:[%s7 + $0x28] sm:$0xff]
    %v197 = vld [vmem:[%s7 + $0x30] sm:$0xff]
    %v198 = vld [vmem:[%s7 + $0x38] sm:$0xff]
    %v199 = vld [vmem:[%s7 + $0x40] sm:$0xff]
    %v200 = vld [vmem:[%s7 + $0x48] sm:$0xff]
    %v201 = vld [vmem:[%s7 + $0x50] sm:$0xff]
    %v202 = vld [vmem:[%s7 + $0x58] sm:$0xff]
    %v203 = vld [vmem:[%s7 + $0x60] sm:$0xff]
    %v204 = vld [vmem:[%s7 + $0x68] sm:$0xff]
    %v205 = vld [vmem:[%s7 + $0x70] sm:$0xff]
    %v206 = vld [vmem:[%s7 + $0x78] sm:$0xff]
    %v207 = vld [vmem:[%s8] sm:$0x1]
    %v209 = vperm.slane %v207, 0
    %211 = vmatpush.msra.mxu0 %v206
    %212 = vmatpush.msra.mxu0 %v205
    %213 = vmatpush.msra.mxu0 %v204
    %214 = vmatpush.msra.mxu0 %v203
    %215 = vmatpush.msra.mxu0 %v202
    %216 = vmatpush.msra.mxu0 %v201
    %217 = vmatpush.msra.mxu0 %v200
    %218 = vmatpush.msra.mxu0 %v199
    %219 = vmatpush.msra.mxu0 %v198
    %220 = vmatpush.msra.mxu0 %v197
    %221 = vmatpush.msra.mxu0 %v196
    %222 = vmatpush.msra.mxu0 %v195
    %223 = vmatpush.msra.mxu0 %v194
    %224 = vmatpush.msra.mxu0 %v193
    %225 = vmatpush.msra.mxu0 %v192
    %226 = vmatpush.msra.mxu0 %v191
    %227 = vmatmul.f32.gmra.mxu0 %v190
    %v228 = vpop.f32.mrf.mxu0
    %v229 = vadd.f32 %v209, %v228
    %230 = vdwg.mxu0
    %vm231 = vcmask 31744
    %232 = vst.msk [vmem:[%s9] sm:$0xff] %vm231, %v229
    // Predicated region
    $region50: #{tpu_custom_call.1} parent=1 // pred_check
      _
    $region51: #{tpu_custom_call.1} parent=1 // pred_check_branch
      %234 = sbr.rel (0) target = $region53
    $region52: #{tpu_custom_call.1} parent=1 // pred_region
      _
    $region53: #{tpu_custom_call.1} parent=1 // pred_fallthru
      _
    // Predicated region
    $region54: #{tpu_custom_call.1} parent=1 // pred_check
      _
    $region55: #{tpu_custom_call.1} parent=1 // pred_check_branch
      %236 = sbr.rel (0) target = $region57
    $region56: #{tpu_custom_call.1} parent=1 // pred_region
      _
    $region57: #{tpu_custom_call.1} parent=1 // pred_fallthru
      _
    %237 = vsyncpa [#allocation3], 1
    %238 = vsyncpa [#allocation5], 1

</llo_original>
